<compile_context>
chip_gen: v5e
topology: v5e:2x2
jax: 0.10.0
libtpu: 0.0.40
codegen_flags: <defaults>
</compile_context>

<pallas_src>
import functools

import jax
import jax.numpy as jnp
from jax import lax
from jax.experimental import pallas as pl
from jax.experimental.pallas import tpu as pltpu


def _round_up(x, m):
    return ((x + m - 1) // m) * m


def _vmem_cap_bytes():
    # Per-core VMEM budget from the actual chip (64 MiB/TC on v7x, 128 MiB on
    # v5e/v6e), leaving headroom for compiler scratch.  Conservative fallback
    # if the query is unavailable.
    try:
        cap = int(pltpu.get_tpu_info().vmem_capacity_bytes)
    except Exception:
        return 48 << 20
    return max(min(int(0.75 * cap), 112 << 20), 32 << 20)


def _pick_row_tile(m):
    # Large fixed tile for DMA efficiency (>=512 rows ~ 85%+ of the HBM
    # roofline); shrink only so small problems still get >= 2 grid steps
    # (pipelining + both v7x TensorCores).
    target = 512
    if m >= 2 * target:
        return target
    return max(8, _round_up(-(-m // 2), 8))


# ---------------------------------------------------------------------------
# Pass 1: im2col matmul (Conv2d) + bias + ReLU; per-TILE partial channel
# sums / sum-of-squares for training-mode BatchNorm statistics.  Every grid
# step writes disjoint outputs, so the grid axis is fully parallel.
# ---------------------------------------------------------------------------
def _conv_relu_stats_kernel(p_ref, w_ref, b_ref, y_ref, sum_ref, ssq_ref, *,
                            valid_rows):
    # Single MXU matmul per row tile; operands keep the incoming dtype,
    # f32 accumulation.
    acc = jnp.dot(p_ref[...], w_ref[...], preferred_element_type=jnp.float32)
    acc = acc + b_ref[...].astype(jnp.float32)
    y = jnp.maximum(acc, 0.0)                                    # ReLU

    y_ref[...] = y.astype(y_ref.dtype)                           # pre-BN activations

    if valid_rows is not None:
        # Rows appended to pad M up to a tile multiple must not pollute the
        # batch statistics (they would contribute ReLU(bias) > 0).
        tm = p_ref.shape[0]
        row = (pl.program_id(0) * tm
               + lax.broadcasted_iota(jnp.int32, (tm, 1), 0))
        y = jnp.where(row < valid_rows, y, 0.0)

    sum_ref[0] = jnp.sum(y, axis=0, keepdims=True)               # per-tile partials
    ssq_ref[0] = jnp.sum(y * y, axis=0, keepdims=True)


# ---------------------------------------------------------------------------
# Pass 2: y * scale + shift with precomputed per-channel scale / shift.
# ---------------------------------------------------------------------------
def _bn_apply_kernel(y_ref, scale_ref, shift_ref, o_ref):
    y = y_ref[...].astype(jnp.float32)
    o_ref[...] = (y * scale_ref[...] + shift_ref[...]).astype(o_ref.dtype)


def conv_block(x_nchw, weight, bias, gamma, beta, *, eps=1e-5):
    """ConvBlock forward.  x_nchw: (N, Cin, H, W); weight: (Cout, Cin, KH, KW)
    (PyTorch layouts); bias/gamma/beta: (Cout,).  Returns (N, Cout, H, W)."""
    N, Cin, H, W = x_nchw.shape
    Cout, _, KH, KW = weight.shape
    pad = (KH - 1) // 2                    # matches the PyTorch module

    # ---- wrapper-side layout glue (tiny next to the kernel traffic) ----
    # TODO(synk): in a full model keep activations NHWC end-to-end and handle
    # the 1-px halo inside the kernel (index_map + border masking) so the
    # pad/transpose/im2col HBM round-trips disappear from the hot path.
    x_nhwc = jnp.transpose(x_nchw, (0, 2, 3, 1))
    x_pad = jnp.pad(x_nhwc, ((0, 0), (pad, pad), (pad, pad), (0, 0)))

    taps = [x_pad[:, kh:kh + H, kw:kw + W, :]
            for kh in range(KH) for kw in range(KW)]
    M = N * H * W
    KK = KH * KW * Cin
    patches = jnp.concatenate(taps, axis=-1).reshape(M, KK)

    # Weight in matching (kh, kw, cin) -> cout order; channels stay UNPADDED
    # (full-extent last block dim); contraction padded only when it exceeds
    # one vreg row.
    w_mat = jnp.transpose(weight, (2, 3, 1, 0)).reshape(KK, Cout)
    Kp = KK if KK <= 128 else _round_up(KK, 128)
    if Kp != KK:
        patches = jnp.pad(patches, ((0, 0), (0, Kp - KK)))
        w_mat = jnp.pad(w_mat, ((0, Kp - KK), (0, 0)))
    b_row = bias.astype(jnp.float32).reshape(1, Cout)

    # Row tiling: fixed large tile, M padded up to a multiple, padded rows
    # masked out of the statistics inside the kernel.
    y_dtype = x_nchw.dtype
    ybytes = jnp.dtype(y_dtype).itemsize
    tm = _pick_row_tile(M)
    cap = _vmem_cap_bytes()

    def footprint(t):
        # double-buffered input/output tiles + grid-invariant weight/bias
        return 4 * (4 * (t * Kp + Kp * Cout + Cout)
                    + ybytes * t * Cout + 4 * 2 * Cout)

    while footprint(tm) > cap and tm > 64:
        tm = _round_up(max(tm // 2, 8), 8)

    n_tiles = -(-M // tm)
    Mp = n_tiles * tm
    if Mp != M:
        patches = jnp.pad(patches, ((0, Mp - M), (0, 0)))
    vmem_limit = int(min(max(footprint(tm), 8 << 20), cap))

    # ---- pass 1: conv + bias + ReLU + per-tile partial stats (parallel) ----
    kern1 = functools.partial(_conv_relu_stats_kernel,
                              valid_rows=M if Mp != M else None)
    y_flat, psum, pssq = pl.pallas_call(
        kern1,
        out_shape=(
            jax.ShapeDtypeStruct((Mp, Cout), y_dtype),            # pre-BN acts
            jax.ShapeDtypeStruct((n_tiles, 1, Cout), jnp.float32),
            jax.ShapeDtypeStruct((n_tiles, 1, Cout), jnp.float32),
        ),
        grid=(n_tiles,),
        in_specs=[
            pl.BlockSpec((tm, Kp), lambda i: (i, 0)),             # patch row tile
            pl.BlockSpec((Kp, Cout), lambda i: (0, 0)),           # full weight
            pl.BlockSpec((1, Cout), lambda i: (0, 0)),            # bias
        ],
        out_specs=(
            pl.BlockSpec((tm, Cout), lambda i: (i, 0)),
            pl.BlockSpec((1, 1, Cout), lambda i: (i, 0, 0)),      # per-tile partials
            pl.BlockSpec((1, 1, Cout), lambda i: (i, 0, 0)),
        ),
        compiler_params=pltpu.CompilerParams(
            dimension_semantics=("parallel",),                    # megacore on v7x
            vmem_limit_bytes=vmem_limit,
        ),
    )(patches, w_mat, b_row)

    # ---- tiny wrapper reduction: per-channel mean/var -> scale/shift ----
    csum = jnp.sum(psum, axis=(0, 1))                             # (Cout,) f32
    cssq = jnp.sum(pssq, axis=(0, 1))
    mean = csum / M
    var = jnp.maximum(cssq / M - mean * mean, 0.0)                # biased (training)
    scale = gamma.astype(jnp.float32) * lax.rsqrt(var + eps)
    shift = beta.astype(jnp.float32) - mean * scale
    scale_row = scale.reshape(1, Cout)
    shift_row = shift.reshape(1, Cout)

    # ---- pass 2: fused multiply-add normalize (parallel, Cout-wide writes) ----
    out_flat = pl.pallas_call(
        _bn_apply_kernel,
        out_shape=jax.ShapeDtypeStruct((Mp, Cout), x_nchw.dtype),
        grid=(n_tiles,),
        in_specs=[
            pl.BlockSpec((tm, Cout), lambda i: (i, 0)),
            pl.BlockSpec((1, Cout), lambda i: (0, 0)),
            pl.BlockSpec((1, Cout), lambda i: (0, 0)),
        ],
        out_specs=pl.BlockSpec((tm, Cout), lambda i: (i, 0)),
        compiler_params=pltpu.CompilerParams(
            dimension_semantics=("parallel",),
            vmem_limit_bytes=vmem_limit,
        ),
    )(y_flat, scale_row, shift_row)

    out = out_flat[:M].reshape(N, H, W, Cout)
    return jnp.transpose(out, (0, 3, 1, 2))                       # back to NCHW


if __name__ == "__main__":
    # Small shapes consistent with the module: N=2, Cin=4, Cout=8, 16x16 spatial.
    N, Cin, Cout, H, W, K = 2, 4, 8, 16, 16, 3

    key = jax.random.PRNGKey(0)
    kx, kw, kb = jax.random.split(key, 3)
    x = jax.random.normal(kx, (N, Cin, H, W), dtype=jnp.float32)

    fan_in = Cin * K * K
    bound = 1.0 / (fan_in ** 0.5)
    weight = jax.random.uniform(kw, (Cout, Cin, K, K), jnp.float32, -bound, bound)
    bias = jax.random.uniform(kb, (Cout,), jnp.float32, -bound, bound)
    gamma = jnp.ones((Cout,), jnp.float32)   # BatchNorm2d default weight
    beta = jnp.zeros((Cout,), jnp.float32)   # BatchNorm2d default bias

    conv_block_jit = jax.jit(conv_block)
    out = conv_block_jit(x, weight, bias, gamma, beta)
    jax.block_until_ready(out)
    assert out.shape == (N, Cout, H, W)

    # Pure-JAX reference: Conv2d -> ReLU -> BatchNorm2d (training forward).
    dn = lax.conv_dimension_numbers(x.shape, weight.shape, ("NCHW", "OIHW", "NCHW"))
    ref = lax.conv_general_dilated(x, weight, (1, 1), [(1, 1), (1, 1)],
                                   dimension_numbers=dn)
    ref = ref + bias[None, :, None, None]
    ref = jnp.maximum(ref, 0.0)
    mu = ref.mean(axis=(0, 2, 3), keepdims=True)
    var = ((ref - mu) ** 2).mean(axis=(0, 2, 3), keepdims=True)   # biased var
    ref = (ref - mu) * lax.rsqrt(var + 1e-5)
    ref = ref * gamma[None, :, None, None] + beta[None, :, None, None]

    assert jnp.allclose(out, ref, atol=2e-3, rtol=2e-3), \
        float(jnp.max(jnp.abs(out - ref)))
    print("KERNEL_OK")
</pallas_src>

<mosaic_0001>
module attributes {stable_mosaic.version = 11 : i64} {
  func.func @_conv_relu_stats_kernel(%arg0: i32, %arg1: memref<256x36xf32, #tpu.memory_space<vmem>>, %arg2: memref<36x8xf32, #tpu.memory_space<vmem>>, %arg3: memref<1x8xf32, #tpu.memory_space<vmem>>, %arg4: memref<256x8xf32, #tpu.memory_space<vmem>>, %arg5: memref<1x1x8xf32, #tpu.memory_space<vmem>>, %arg6: memref<1x1x8xf32, #tpu.memory_space<vmem>>) attributes {dimension_semantics = [#tpu.dimension_semantics<parallel>], iteration_bounds = array<i64: 2>, scalar_prefetch = 0 : i64, scratch_operands = 0 : i64, tpu.core_type = #tpu.core_type<tc>, window_params = [{transform_indices = @transform_0, window_bounds = array<i64: 256, 36>}, {pipeline_mode = #tpu.pipeline_mode<synchronous>, transform_indices = @transform_1, window_bounds = array<i64: 36, 8>}, {pipeline_mode = #tpu.pipeline_mode<synchronous>, transform_indices = @transform_2, window_bounds = array<i64: 1, 8>}, {transform_indices = @transform_3, window_bounds = array<i64: 256, 8>}, {transform_indices = @transform_4, window_bounds = array<i64: 1, 1, 8>}, {transform_indices = @transform_5, window_bounds = array<i64: 1, 1, 8>}]} {
    %c0 = arith.constant 0 : index
    %c0_0 = arith.constant 0 : index
    %0 = vector.load %arg1[%c0, %c0_0] : memref<256x36xf32, #tpu.memory_space<vmem>>, vector<256x36xf32>
    %c0_1 = arith.constant 0 : index
    %c0_2 = arith.constant 0 : index
    %1 = vector.load %arg2[%c0_1, %c0_2] : memref<36x8xf32, #tpu.memory_space<vmem>>, vector<36x8xf32>
    %cst = arith.constant dense<0.000000e+00> : vector<256x8xf32>
    %2 = tpu.matmul %0, %1, %cst {dimension_numbers = #tpu.dot_dimension_numbers<[1], [0], [0], [1], [0, 0, 1, 1], [], []>} : vector<256x36xf32>, vector<36x8xf32>, vector<256x8xf32> -> vector<256x8xf32>
    %c0_3 = arith.constant 0 : index
    %c0_4 = arith.constant 0 : index
    %3 = vector.load %arg3[%c0_3, %c0_4] : memref<1x8xf32, #tpu.memory_space<vmem>>, vector<1x8xf32>
    %4 = vector.broadcast %3 : vector<1x8xf32> to vector<256x8xf32>
    %5 = arith.addf %2, %4 : vector<256x8xf32>
    %cst_5 = arith.constant 0.000000e+00 : f32
    %6 = vector.broadcast %cst_5 : f32 to vector<256x8xf32>
    %7 = arith.maximumf %5, %6 : vector<256x8xf32>
    %c0_6 = arith.constant 0 : index
    %c0_7 = arith.constant 0 : index
    %8 = vector.load %arg4[%c0_6, %c0_7] : memref<256x8xf32, #tpu.memory_space<vmem>>, vector<256x8xf32>
    tpu.vector_store %arg4[%c0_6, %c0_7], %7 {strides = array<i32>} : memref<256x8xf32, #tpu.memory_space<vmem>>, vector<256x8xf32>,
    %cst_8 = arith.constant dense<0.000000e+00> : vector<8xf32>
    %9 = vector.multi_reduction <add>, %7, %cst_8 [0] : vector<256x8xf32> to vector<8xf32>
    %10 = vector.shape_cast %9 : vector<8xf32> to vector<1x8xf32>
    %c0_9 = arith.constant 0 : index
    %c0_10 = arith.constant 0 : index
    %c0_11 = arith.constant 0 : index
    %11 = vector.load %arg5[%c0_9, %c0_10, %c0_11] : memref<1x1x8xf32, #tpu.memory_space<vmem>>, vector<1x1x8xf32>
    %12 = vector.shape_cast %11 : vector<1x1x8xf32> to vector<1x8xf32>
    %13 = vector.shape_cast %10 : vector<1x8xf32> to vector<1x1x8xf32>
    tpu.vector_store %arg5[%c0_9, %c0_10, %c0_11], %13 {strides = array<i32>} : memref<1x1x8xf32, #tpu.memory_space<vmem>>, vector<1x1x8xf32>,
    %14 = arith.mulf %7, %7 : vector<256x8xf32>
    %cst_12 = arith.constant dense<0.000000e+00> : vector<8xf32>
    %15 = vector.multi_reduction <add>, %14, %cst_12 [0] : vector<256x8xf32> to vector<8xf32>
    %16 = vector.shape_cast %15 : vector<8xf32> to vector<1x8xf32>
    %c0_13 = arith.constant 0 : index
    %c0_14 = arith.constant 0 : index
    %c0_15 = arith.constant 0 : index
    %17 = vector.load %arg6[%c0_13, %c0_14, %c0_15] : memref<1x1x8xf32, #tpu.memory_space<vmem>>, vector<1x1x8xf32>
    %18 = vector.shape_cast %17 : vector<1x1x8xf32> to vector<1x8xf32>
    %19 = vector.shape_cast %16 : vector<1x8xf32> to vector<1x1x8xf32>
    tpu.vector_store %arg6[%c0_13, %c0_14, %c0_15], %19 {strides = array<i32>} : memref<1x1x8xf32, #tpu.memory_space<vmem>>, vector<1x1x8xf32>,
    return
  }
  func.func @transform_0(%arg0: i32) -> (i32, i32) {
    %c0_i32 = arith.constant 0 : i32
    %c0_i32_0 = arith.constant 0 : i32
    return %arg0, %c0_i32 : i32, i32
  }
  func.func @transform_1(%arg0: i32) -> (i32, i32) {
    %c0_i32 = arith.constant 0 : i32
    %c0_i32_0 = arith.constant 0 : i32
    %c0_i32_1 = arith.constant 0 : i32
    return %c0_i32, %c0_i32_0 : i32, i32
  }
  func.func @transform_2(%arg0: i32) -> (i32, i32) {
    %c0_i32 = arith.constant 0 : i32
    %c0_i32_0 = arith.constant 0 : i32
    %c0_i32_1 = arith.constant 0 : i32
    return %c0_i32, %c0_i32_0 : i32, i32
  }
  func.func @transform_3(%arg0: i32) -> (i32, i32) {
    %c0_i32 = arith.constant 0 : i32
    %c0_i32_0 = arith.constant 0 : i32
    return %arg0, %c0_i32 : i32, i32
  }
  func.func @transform_4(%arg0: i32) -> (i32, i32, i32) {
    %c0_i32 = arith.constant 0 : i32
    %c0_i32_0 = arith.constant 0 : i32
    %c0_i32_1 = arith.constant 0 : i32
    return %arg0, %c0_i32, %c0_i32_0 : i32, i32, i32
  }
  func.func @transform_5(%arg0: i32) -> (i32, i32, i32) {
    %c0_i32 = arith.constant 0 : i32
    %c0_i32_0 = arith.constant 0 : i32
    %c0_i32_1 = arith.constant 0 : i32
    return %arg0, %c0_i32, %c0_i32_0 : i32, i32, i32
  }
}

module attributes {stable_mosaic.version = 11 : i64} {
  func.func @_bn_apply_kernel(%arg0: i32, %arg1: memref<256x8xf32, #tpu.memory_space<vmem>>, %arg2: memref<1x8xf32, #tpu.memory_space<vmem>>, %arg3: memref<1x8xf32, #tpu.memory_space<vmem>>, %arg4: memref<256x8xf32, #tpu.memory_space<vmem>>) attributes {dimension_semantics = [#tpu.dimension_semantics<parallel>], iteration_bounds = array<i64: 2>, scalar_prefetch = 0 : i64, scratch_operands = 0 : i64, tpu.core_type = #tpu.core_type<tc>, window_params = [{transform_indices = @transform_0, window_bounds = array<i64: 256, 8>}, {pipeline_mode = #tpu.pipeline_mode<synchronous>, transform_indices = @transform_1, window_bounds = array<i64: 1, 8>}, {pipeline_mode = #tpu.pipeline_mode<synchronous>, transform_indices = @transform_2, window_bounds = array<i64: 1, 8>}, {transform_indices = @transform_3, window_bounds = array<i64: 256, 8>}]} {
    %c0 = arith.constant 0 : index
    %c0_0 = arith.constant 0 : index
    %0 = vector.load %arg1[%c0, %c0_0] : memref<256x8xf32, #tpu.memory_space<vmem>>, vector<256x8xf32>
    %c0_1 = arith.constant 0 : index
    %c0_2 = arith.constant 0 : index
    %1 = vector.load %arg2[%c0_1, %c0_2] : memref<1x8xf32, #tpu.memory_space<vmem>>, vector<1x8xf32>
    %2 = vector.broadcast %1 : vector<1x8xf32> to vector<256x8xf32>
    %3 = arith.mulf %0, %2 : vector<256x8xf32>
    %c0_3 = arith.constant 0 : index
    %c0_4 = arith.constant 0 : index
    %4 = vector.load %arg3[%c0_3, %c0_4] : memref<1x8xf32, #tpu.memory_space<vmem>>, vector<1x8xf32>
    %5 = vector.broadcast %4 : vector<1x8xf32> to vector<256x8xf32>
    %6 = arith.addf %3, %5 : vector<256x8xf32>
    %c0_5 = arith.constant 0 : index
    %c0_6 = arith.constant 0 : index
    %7 = vector.load %arg4[%c0_5, %c0_6] : memref<256x8xf32, #tpu.memory_space<vmem>>, vector<256x8xf32>
    tpu.vector_store %arg4[%c0_5, %c0_6], %6 {strides = array<i32>} : memref<256x8xf32, #tpu.memory_space<vmem>>, vector<256x8xf32>,
    return
  }
  func.func @transform_0(%arg0: i32) -> (i32, i32) {
    %c0_i32 = arith.constant 0 : i32
    %c0_i32_0 = arith.constant 0 : i32
    return %arg0, %c0_i32 : i32, i32
  }
  func.func @transform_1(%arg0: i32) -> (i32, i32) {
    %c0_i32 = arith.constant 0 : i32
    %c0_i32_0 = arith.constant 0 : i32
    %c0_i32_1 = arith.constant 0 : i32
    return %c0_i32, %c0_i32_0 : i32, i32
  }
  func.func @transform_2(%arg0: i32) -> (i32, i32) {
    %c0_i32 = arith.constant 0 : i32
    %c0_i32_0 = arith.constant 0 : i32
    %c0_i32_1 = arith.constant 0 : i32
    return %c0_i32, %c0_i32_0 : i32, i32
  }
  func.func @transform_3(%arg0: i32) -> (i32, i32) {
    %c0_i32 = arith.constant 0 : i32
    %c0_i32_0 = arith.constant 0 : i32
    return %arg0, %c0_i32 : i32, i32
  }
}

</mosaic_0001>

<llo_original>
// kernel: conv_block.3
$region0: #{conv_block.3}
  #allocation0 [shape = 'u32[]', space=smem, size = 0x4, offset = 0x4, fixed_abs, tag = 'smem constant byte address 0x4 - core index']
  #allocation1 [shape = 'u32[72,128]{1,0:T(1,128)}', space=vmem, size = 0x9000, scoped, tag = 'internal scratch']
  %s0 = inlined_call_operand.vmem [shape: f32[512,8], index: 0, kind: input, shape index: {}]
  %s1 = inlined_call_operand.vmem [shape: f32[1,8], index: 1, kind: input, shape index: {}]
  %s2 = inlined_call_operand.vmem [shape: f32[1,8], index: 2, kind: input, shape index: {}]
  %s3 = inlined_call_operand.vmem [shape: f32[512,8], index: 3, kind: output, shape index: {}]
  %s4 = sld [smem:[#allocation0]]
  $region45: #{conv_block.3} parent=0
    _
  %s6 = ssub.s32 1, %s4
  %s7 = scalar_select 0, %s6, %s4
  loop: start=0, step=1, limit=4
  $region2: #{conv_block.3} parent=0 // loop_pre_header
    _
  $region3: #{conv_block.3} parent=0 // loop_header
    %s9 = sphi 0, %s13
    %p10 = scmp.ge.s32.totalorder %s9, 4
    %s19 = sphi 0, %s21
    %s22 = sphi 0, %s19
    %s23 = sphi 0, %s22
    %s39 = sphi 0, %s23
    %s43 = sphi 0, %s43
    %s45 = sphi 0, %s43
    %s46 = sphi 0, %s45
    %s60 = sphi 0, %s46
    %s64 = sphi 0, %s64
    %s66 = sphi 0, %s64
    %s67 = sphi 0, %s66
    %s81 = sphi 0, %s67
    %s87 = sphi 0, %s89
    %s90 = sphi 0, %s87
    %s91 = sphi 0, %s90
    %s107 = sphi 0, %s91
  $region4: #{conv_block.3} parent=0 // loop_header_branch
    %12 = sbr.rel (%p10) target = $region8
  $region5: #{conv_block.3} parent=0 // loop_body
    %s14 = ssub.s32 %s9, 1
    %s15 = ssub.s32 %s9, 2
    %s16 = sadd.s32 %s9, 1
    %s17 = ssub.s32 %s9, %s16
    %p18 = scmp.eq.s32.totalorder %s17, 0
    %s20 = sadd.s32 %s19, 1
    %s21 = scalar_select %p18, %s19, %s20
    %p24 = pneg %p18
    %p25 = scmp.eq.s32.totalorder %s9, 1
    %p26 = por %p24, %p25
    %p27 = scmp.ne.s32.totalorder %s19, %s22
    %p28 = scmp.eq.s32.totalorder %s9, 0
    %p29 = por %p27, %p28
    %p30 = scmp.ne.s32.totalorder %s19, %s22
    %p31 = scmp.eq.s32.totalorder %s14, 1
    %p32 = por %p30, %p31
    %p33 = scmp.ne.s32.totalorder %s22, %s23
    %p34 = scmp.eq.s32.totalorder %s14, 0
    %p35 = por %p33, %p34
    %p36 = scmp.ne.s32.totalorder %s22, %s23
    %p37 = scmp.eq.s32.totalorder %s15, 1
    %p38 = por %p36, %p37
    %p40 = scmp.ne.s32.totalorder %s23, %s39
    %p41 = scmp.eq.s32.totalorder %s15, 0
    %p42 = por %p40, %p41
    %s44 = sadd.s32 %s43, 1
    %p47 = scmp.eq.s32.totalorder %s9, 1
    %p48 = scmp.ne.s32.totalorder %s43, %s45
    %p49 = scmp.eq.s32.totalorder %s9, 0
    %p50 = por %p48, %p49
    %p51 = scmp.ne.s32.totalorder %s43, %s45
    %p52 = scmp.eq.s32.totalorder %s14, 1
    %p53 = por %p51, %p52
    %p54 = scmp.ne.s32.totalorder %s45, %s46
    %p55 = scmp.eq.s32.totalorder %s14, 0
    %p56 = por %p54, %p55
    %p57 = scmp.ne.s32.totalorder %s45, %s46
    %p58 = scmp.eq.s32.totalorder %s15, 1
    %p59 = por %p57, %p58
    %p61 = scmp.ne.s32.totalorder %s46, %s60
    %p62 = scmp.eq.s32.totalorder %s15, 0
    %p63 = por %p61, %p62
    %s65 = sadd.s32 %s64, 1
    %p68 = scmp.eq.s32.totalorder %s9, 1
    %p69 = scmp.ne.s32.totalorder %s64, %s66
    %p70 = scmp.eq.s32.totalorder %s9, 0
    %p71 = por %p69, %p70
    %p72 = scmp.ne.s32.totalorder %s64, %s66
    %p73 = scmp.eq.s32.totalorder %s14, 1
    %p74 = por %p72, %p73
    %p75 = scmp.ne.s32.totalorder %s66, %s67
    %p76 = scmp.eq.s32.totalorder %s14, 0
    %p77 = por %p75, %p76
    %p78 = scmp.ne.s32.totalorder %s66, %s67
    %p79 = scmp.eq.s32.totalorder %s15, 1
    %p80 = por %p78, %p79
    %p82 = scmp.ne.s32.totalorder %s67, %s81
    %p83 = scmp.eq.s32.totalorder %s15, 0
    %p84 = por %p82, %p83
    %s85 = ssub.s32 %s9, %s16
    %p86 = scmp.eq.s32.totalorder %s85, 0
    %s88 = sadd.s32 %s87, 1
    %s89 = scalar_select %p86, %s87, %s88
    %p92 = pneg %p86
    %p93 = scmp.eq.s32.totalorder %s9, 1
    %p94 = por %p92, %p93
    %p95 = scmp.ne.s32.totalorder %s87, %s90
    %p96 = scmp.eq.s32.totalorder %s9, 0
    %p97 = por %p95, %p96
    %p98 = scmp.ne.s32.totalorder %s87, %s90
    %p99 = scmp.eq.s32.totalorder %s14, 1
    %p100 = por %p98, %p99
    %p101 = scmp.ne.s32.totalorder %s90, %s91
    %p102 = scmp.eq.s32.totalorder %s14, 0
    %p103 = por %p101, %p102
    %p104 = scmp.ne.s32.totalorder %s90, %s91
    %p105 = scmp.eq.s32.totalorder %s15, 1
    %p106 = por %p104, %p105
    %p108 = scmp.ne.s32.totalorder %s91, %s107
    %p109 = scmp.eq.s32.totalorder %s15, 0
    %p110 = por %p108, %p109
    %p111 = scmp.le.s32.totalorder 1, %s9
    %p112 = scmp.lt.s32.totalorder %s9, 3
    %p113 = pnand %p111, %p112
    %p114 = pneg %p113
    // Predicated region
    $region9: #{conv_block.3} parent=5 // pred_check
      _
    $region10: #{conv_block.3} parent=5 // pred_check_branch
      %116 = sbr.rel (%p113) target = $region12
    $region11: #{conv_block.3} parent=5 // pred_region
      %s117 = ssub.s32 %s9, 1
      // Predicated region
      $region13: #{conv_block.3} parent=11 // pred_check
        %p118 = pneg %p56
      $region14: #{conv_block.3} parent=11 // pred_check_branch
        %120 = sbr.rel (%p118) target = $region16
      $region15: #{conv_block.3} parent=11 // pred_region
        _
      $region16: #{conv_block.3} parent=11 // pred_fallthru
        _
      // Predicated region
      $region17: #{conv_block.3} parent=11 // pred_check
        %p121 = pneg %p77
      $region18: #{conv_block.3} parent=11 // pred_check_branch
        %123 = sbr.rel (%p121) target = $region20
      $region19: #{conv_block.3} parent=11 // pred_region
        _
      $region20: #{conv_block.3} parent=11 // pred_fallthru
        _
    $region12: #{conv_block.3} parent=5 // pred_fallthru
      _
    %p124 = scmp.lt.s32.totalorder %s9, 2
    // Predicated region
    $region21: #{conv_block.3} parent=5 // pred_check
      %p125 = pneg %p124
    $region22: #{conv_block.3} parent=5 // pred_check_branch
      %127 = sbr.rel (%p125) target = $region24
    $region23: #{conv_block.3} parent=5 // pred_region
      // Predicated region
      $region25: #{conv_block.3} parent=23 // pred_check
        %p128 = pneg %p29
      $region26: #{conv_block.3} parent=23 // pred_check_branch
        %130 = sbr.rel (%p128) target = $region28
      $region27: #{conv_block.3} parent=23 // pred_region
        %s131 = smul.u32 32, %s9
        %p132 = scmp.lt.s32.totalorder %s131, 63
        %s133 = scalar_select %p132, %s131, 63
        %s134 = smul.addr %s133, 8
        %s135 = scalar_lea.vmem %s0, %s134
        %s136 = smul.u32 32, %s9
      $region28: #{conv_block.3} parent=23 // pred_fallthru
        _
    $region24: #{conv_block.3} parent=5 // pred_fallthru
      _
    %p137 = scmp.le.s32.totalorder 1, %s9
    %p138 = scmp.lt.s32.totalorder %s9, 3
    %p139 = pnand %p137, %p138
    %p140 = pneg %p139
    // Predicated region
    $region29: #{conv_block.3} parent=5 // pred_check
      _
    $region30: #{conv_block.3} parent=5 // pred_check_branch
      %142 = sbr.rel (%p139) target = $region32
    $region31: #{conv_block.3} parent=5 // pred_region
      %s143 = ssub.s32 %s9, 1
      %s144 = smul.u32 32, %s14
      %p145 = scmp.lt.s32.totalorder %s144, 63
      %s146 = scalar_select %p145, %s144, 63
      %s147 = smul.addr %s146, 8
      %s148 = scalar_lea.vmem %s0, %s147
      %p149 = pneg %p35
      %p150 = pneg %p32
      %p151 = pneg %p56
      %p152 = pneg %p53
      %p153 = pneg %p77
      %p154 = pneg %p74
      %p155 = pneg %p103
      %p156 = pneg %p100
      %s157 = smul.u32 32, %s14
      %p158 = scmp.lt.s32.totalorder %s157, 63
      %s159 = scalar_select %p158, %s157, 63
      %s160 = smul.addr %s159, 8
      %s161 = scalar_lea.vmem %s3, %s160
      %s162 = smul.u32 32, %s14
      %p163 = scmp.lt.s32.totalorder %s162, 63
      %s164 = scalar_select %p163, %s162, 63
      %s165 = smul.addr %s164, 8
      %s166 = scalar_lea.vmem %s0, %s165
      %s167 = smul.u32 32, %s14
      %s168 = smul.u32 32, %s14
      %p169 = scmp.lt.s32.totalorder %s168, 63
      %s170 = scalar_select %p169, %s168, 63
      %s171 = smul.addr %s170, 8
      %s172 = scalar_lea.vmem %s3, %s171
      %s173 = smul.u32 32, %s14
      %v174 = vld [vmem:[%s166] sm:$0xff]
      %v175 = vld [vmem:[%s166 + $0x8] sm:$0xff]
      %v176 = vld [vmem:[%s166 + $0x10] sm:$0xff]
      %v177 = vld [vmem:[%s166 + $0x18] sm:$0xff]
      %v178 = vld [vmem:[%s166 + $0x20] sm:$0xff]
      %v179 = vld [vmem:[%s166 + $0x28] sm:$0xff]
      %v180 = vld [vmem:[%s166 + $0x30] sm:$0xff]
      %v181 = vld [vmem:[%s166 + $0x38] sm:$0xff]
      %v182 = vld [vmem:[%s166 + $0x40] sm:$0xff]
      %v183 = vld [vmem:[%s166 + $0x48] sm:$0xff]
      %v184 = vld [vmem:[%s166 + $0x50] sm:$0xff]
      %v185 = vld [vmem:[%s166 + $0x58] sm:$0xff]
      %v186 = vld [vmem:[%s166 + $0x60] sm:$0xff]
      %v187 = vld [vmem:[%s166 + $0x68] sm:$0xff]
      %v188 = vld [vmem:[%s166 + $0x70] sm:$0xff]
      %v189 = vld [vmem:[%s166 + $0x78] sm:$0xff]
      %v190 = vld [vmem:[%s166 + $0x80] sm:$0xff]
      %v191 = vld [vmem:[%s166 + $0x88] sm:$0xff]
      %v192 = vld [vmem:[%s166 + $0x90] sm:$0xff]
      %v193 = vld [vmem:[%s166 + $0x98] sm:$0xff]
      %v194 = vld [vmem:[%s166 + $0xa0] sm:$0xff]
      %v195 = vld [vmem:[%s166 + $0xa8] sm:$0xff]
      %v196 = vld [vmem:[%s166 + $0xb0] sm:$0xff]
      %v197 = vld [vmem:[%s166 + $0xb8] sm:$0xff]
      %v198 = vld [vmem:[%s166 + $0xc0] sm:$0xff]
      %v199 = vld [vmem:[%s166 + $0xc8] sm:$0xff]
      %v200 = vld [vmem:[%s166 + $0xd0] sm:$0xff]
      %v201 = vld [vmem:[%s166 + $0xd8] sm:$0xff]
      %v202 = vld [vmem:[%s166 + $0xe0] sm:$0xff]
      %v203 = vld [vmem:[%s166 + $0xe8] sm:$0xff]
      %v204 = vld [vmem:[%s166 + $0xf0] sm:$0xff]
      %v205 = vld [vmem:[%s166 + $0xf8] sm:$0xff]
      %v206 = vld [vmem:[%s1] sm:$0x1]
      %v208 = vperm.slane %v206, 0
      %v210 = vmul.f32 %v174, %v208
      %v211 = vmul.f32 %v175, %v208
      %v212 = vmul.f32 %v176, %v208
      %v213 = vmul.f32 %v177, %v208
      %v214 = vmul.f32 %v178, %v208
      %v215 = vmul.f32 %v179, %v208
      %v216 = vmul.f32 %v180, %v208
      %v217 = vmul.f32 %v181, %v208
      %v218 = vmul.f32 %v182, %v208
      %v219 = vmul.f32 %v183, %v208
      %v220 = vmul.f32 %v184, %v208
      %v221 = vmul.f32 %v185, %v208
      %v222 = vmul.f32 %v186, %v208
      %v223 = vmul.f32 %v187, %v208
      %v224 = vmul.f32 %v188, %v208
      %v225 = vmul.f32 %v189, %v208
      %v226 = vmul.f32 %v190, %v208
      %v227 = vmul.f32 %v191, %v208
      %v228 = vmul.f32 %v192, %v208
      %v229 = vmul.f32 %v193, %v208
      %v230 = vmul.f32 %v194, %v208
      %v231 = vmul.f32 %v195, %v208
      %v232 = vmul.f32 %v196, %v208
      %v233 = vmul.f32 %v197, %v208
      %v234 = vmul.f32 %v198, %v208
      %v235 = vmul.f32 %v199, %v208
      %v236 = vmul.f32 %v200, %v208
      %v237 = vmul.f32 %v201, %v208
      %v238 = vmul.f32 %v202, %v208
      %v239 = vmul.f32 %v203, %v208
      %v240 = vmul.f32 %v204, %v208
      %v241 = vmul.f32 %v205, %v208
      %v242 = vld [vmem:[%s2] sm:$0x1]
      %v244 = vperm.slane %v242, 0
      %v246 = vadd.f32 %v210, %v244
      %v247 = vadd.f32 %v211, %v244
      %v248 = vadd.f32 %v212, %v244
      %v249 = vadd.f32 %v213, %v244
      %v250 = vadd.f32 %v214, %v244
      %v251 = vadd.f32 %v215, %v244
      %v252 = vadd.f32 %v216, %v244
      %v253 = vadd.f32 %v217, %v244
      %v254 = vadd.f32 %v218, %v244
      %v255 = vadd.f32 %v219, %v244
      %v256 = vadd.f32 %v220, %v244
      %v257 = vadd.f32 %v221, %v244
      %v258 = vadd.f32 %v222, %v244
      %v259 = vadd.f32 %v223, %v244
      %v260 = vadd.f32 %v224, %v244
      %v261 = vadd.f32 %v225, %v244
      %v262 = vadd.f32 %v226, %v244
      %v263 = vadd.f32 %v227, %v244
      %v264 = vadd.f32 %v228, %v244
      %v265 = vadd.f32 %v229, %v244
      %v266 = vadd.f32 %v230, %v244
      %v267 = vadd.f32 %v231, %v244
      %v268 = vadd.f32 %v232, %v244
      %v269 = vadd.f32 %v233, %v244
      %v270 = vadd.f32 %v234, %v244
      %v271 = vadd.f32 %v235, %v244
      %v272 = vadd.f32 %v236, %v244
      %v273 = vadd.f32 %v237, %v244
      %v274 = vadd.f32 %v238, %v244
      %v275 = vadd.f32 %v239, %v244
      %v276 = vadd.f32 %v240, %v244
      %v277 = vadd.f32 %v241, %v244
      %vm278 = vcmask 64512
      %279 = vst.msk [vmem:[%s172] sm:$0xff] %vm278, %v246
      %280 = vst.msk [vmem:[%s172 + $0x8] sm:$0xff] %vm278, %v247
      %281 = vst.msk [vmem:[%s172 + $0x10] sm:$0xff] %vm278, %v248
      %282 = vst.msk [vmem:[%s172 + $0x18] sm:$0xff] %vm278, %v249
      %283 = vst.msk [vmem:[%s172 + $0x20] sm:$0xff] %vm278, %v250
      %284 = vst.msk [vmem:[%s172 + $0x28] sm:$0xff] %vm278, %v251
      %285 = vst.msk [vmem:[%s172 + $0x30] sm:$0xff] %vm278, %v252
      %286 = vst.msk [vmem:[%s172 + $0x38] sm:$0xff] %vm278, %v253
      %287 = vst.msk [vmem:[%s172 + $0x40] sm:$0xff] %vm278, %v254
      %288 = vst.msk [vmem:[%s172 + $0x48] sm:$0xff] %vm278, %v255
      %289 = vst.msk [vmem:[%s172 + $0x50] sm:$0xff] %vm278, %v256
      %290 = vst.msk [vmem:[%s172 + $0x58] sm:$0xff] %vm278, %v257
      %291 = vst.msk [vmem:[%s172 + $0x60] sm:$0xff] %vm278, %v258
      %292 = vst.msk [vmem:[%s172 + $0x68] sm:$0xff] %vm278, %v259
      %293 = vst.msk [vmem:[%s172 + $0x70] sm:$0xff] %vm278, %v260
      %294 = vst.msk [vmem:[%s172 + $0x78] sm:$0xff] %vm278, %v261
      %295 = vst.msk [vmem:[%s172 + $0x80] sm:$0xff] %vm278, %v262
      %296 = vst.msk [vmem:[%s172 + $0x88] sm:$0xff] %vm278, %v263
      %297 = vst.msk [vmem:[%s172 + $0x90] sm:$0xff] %vm278, %v264
      %298 = vst.msk [vmem:[%s172 + $0x98] sm:$0xff] %vm278, %v265
      %299 = vst.msk [vmem:[%s172 + $0xa0] sm:$0xff] %vm278, %v266
      %300 = vst.msk [vmem:[%s172 + $0xa8] sm:$0xff] %vm278, %v267
      %301 = vst.msk [vmem:[%s172 + $0xb0] sm:$0xff] %vm278, %v268
      %302 = vst.msk [vmem:[%s172 + $0xb8] sm:$0xff] %vm278, %v269
      %303 = vst.msk [vmem:[%s172 + $0xc0] sm:$0xff] %vm278, %v270
      %304 = vst.msk [vmem:[%s172 + $0xc8] sm:$0xff] %vm278, %v271
      %305 = vst.msk [vmem:[%s172 + $0xd0] sm:$0xff] %vm278, %v272
      %306 = vst.msk [vmem:[%s172 + $0xd8] sm:$0xff] %vm278, %v273
      %307 = vst.msk [vmem:[%s172 + $0xe0] sm:$0xff] %vm278, %v274
      %308 = vst.msk [vmem:[%s172 + $0xe8] sm:$0xff] %vm278, %v275
      %309 = vst.msk [vmem:[%s172 + $0xf0] sm:$0xff] %vm278, %v276
      %310 = vst.msk [vmem:[%s172 + $0xf8] sm:$0xff] %vm278, %v277
      %s311 = smul.u32 32, %s14
      %p312 = scmp.lt.s32.totalorder %s311, 63
      %s313 = scalar_select %p312, %s311, 63
      %s314 = smul.addr %s313, 8
      %s315 = scalar_lea.vmem %s3, %s314
      // Predicated region
      $region33: #{conv_block.3} parent=31 // pred_check
        %p316 = pneg %p100
      $region34: #{conv_block.3} parent=31 // pred_check_branch
        %318 = sbr.rel (%p316) target = $region36
      $region35: #{conv_block.3} parent=31 // pred_region
        %s319 = smul.u32 32, %s14
      $region36: #{conv_block.3} parent=31 // pred_fallthru
        _
    $region32: #{conv_block.3} parent=5 // pred_fallthru
      _
    %p320 = scmp.le.s32.totalorder 2, %s9
    // Predicated region
    $region37: #{conv_block.3} parent=5 // pred_check
      %p321 = pneg %p320
    $region38: #{conv_block.3} parent=5 // pred_check_branch
      %323 = sbr.rel (%p321) target = $region40
    $region39: #{conv_block.3} parent=5 // pred_region
      %s324 = ssub.s32 %s9, 2
      // Predicated region
      $region41: #{conv_block.3} parent=39 // pred_check
        %p325 = pneg %p106
      $region42: #{conv_block.3} parent=39 // pred_check_branch
        %327 = sbr.rel (%p325) target = $region44
      $region43: #{conv_block.3} parent=39 // pred_region
        %s328 = smul.u32 32, %s15
        %p329 = scmp.lt.s32.totalorder %s328, 63
        %s330 = scalar_select %p329, %s328, 63
        %s331 = smul.addr %s330, 8
        %s332 = scalar_lea.vmem %s3, %s331
      $region44: #{conv_block.3} parent=39 // pred_fallthru
        _
    $region40: #{conv_block.3} parent=5 // pred_fallthru
      _
  $region6: #{conv_block.3} parent=0 // loop_footer
    %s13 = sadd.s32 1, %s9
  $region7: #{conv_block.3} parent=0 // loop_footer_branch
    %8 = sbr.rel target = $region3
  $region8: #{conv_block.3} parent=0 // loop_exit
    _

// kernel: conv_block.2
$region0: #{conv_block.2}
  #allocation0 [shape = 'u32[]', space=smem, size = 0x4, offset = 0x4, fixed_abs, tag = 'smem constant byte address 0x4 - core index']
  #allocation1 [shape = 'u32[72,128]{1,0:T(1,128)}', space=vmem, size = 0x9000, scoped, tag = 'internal scratch']
  %s0 = inlined_call_operand.vmem [shape: f32[512,36], index: 0, kind: input, shape index: {}]
  %s1 = inlined_call_operand.vmem [shape: f32[36,8], index: 1, kind: input, shape index: {}]
  %s2 = inlined_call_operand.vmem [shape: f32[1,8], index: 2, kind: input, shape index: {}]
  %s3 = inlined_call_operand.vmem [shape: f32[512,8], index: 3, kind: output, shape index: {0}]
  %s4 = inlined_call_operand.vmem [shape: f32[2,1,8], index: 4, kind: output, shape index: {1}]
  %s5 = inlined_call_operand.vmem [shape: f32[2,1,8], index: 5, kind: output, shape index: {2}]
  %6 = xla_tuple %s3, %s4, %s5
  %s7 = sld [smem:[#allocation0]]
  $region61: #{conv_block.2} parent=0
    _
  %s9 = ssub.s32 1, %s7
  %s10 = scalar_select 0, %s9, %s7
  loop: start=0, step=1, limit=4
  $region2: #{conv_block.2} parent=0 // loop_pre_header
    _
  $region3: #{conv_block.2} parent=0 // loop_header
    %s12 = sphi 0, %s16
    %p13 = scmp.ge.s32.totalorder %s12, 4
    %s22 = sphi 0, %s24
    %s25 = sphi 0, %s22
    %s26 = sphi 0, %s25
    %s42 = sphi 0, %s26
    %s46 = sphi 0, %s46
    %s48 = sphi 0, %s46
    %s49 = sphi 0, %s48
    %s63 = sphi 0, %s49
    %s67 = sphi 0, %s67
    %s69 = sphi 0, %s67
    %s70 = sphi 0, %s69
    %s84 = sphi 0, %s70
    %s90 = sphi 0, %s92
    %s93 = sphi 0, %s90
    %s94 = sphi 0, %s93
    %s110 = sphi 0, %s94
    %s116 = sphi 0, %s118
    %s119 = sphi 0, %s116
    %s120 = sphi 0, %s119
    %s136 = sphi 0, %s120
    %s142 = sphi 0, %s144
    %s145 = sphi 0, %s142
    %s146 = sphi 0, %s145
    %s162 = sphi 0, %s146
  $region4: #{conv_block.2} parent=0 // loop_header_branch
    %15 = sbr.rel (%p13) target = $region8
  $region5: #{conv_block.2} parent=0 // loop_body
    %s17 = ssub.s32 %s12, 1
    %s18 = ssub.s32 %s12, 2
    %s19 = sadd.s32 %s12, 1
    %s20 = ssub.s32 %s12, %s19
    %p21 = scmp.eq.s32.totalorder %s20, 0
    %s23 = sadd.s32 %s22, 1
    %s24 = scalar_select %p21, %s22, %s23
    %p27 = pneg %p21
    %p28 = scmp.eq.s32.totalorder %s12, 1
    %p29 = por %p27, %p28
    %p30 = scmp.ne.s32.totalorder %s22, %s25
    %p31 = scmp.eq.s32.totalorder %s12, 0
    %p32 = por %p30, %p31
    %p33 = scmp.ne.s32.totalorder %s22, %s25
    %p34 = scmp.eq.s32.totalorder %s17, 1
    %p35 = por %p33, %p34
    %p36 = scmp.ne.s32.totalorder %s25, %s26
    %p37 = scmp.eq.s32.totalorder %s17, 0
    %p38 = por %p36, %p37
    %p39 = scmp.ne.s32.totalorder %s25, %s26
    %p40 = scmp.eq.s32.totalorder %s18, 1
    %p41 = por %p39, %p40
    %p43 = scmp.ne.s32.totalorder %s26, %s42
    %p44 = scmp.eq.s32.totalorder %s18, 0
    %p45 = por %p43, %p44
    %s47 = sadd.s32 %s46, 1
    %p50 = scmp.eq.s32.totalorder %s12, 1
    %p51 = scmp.ne.s32.totalorder %s46, %s48
    %p52 = scmp.eq.s32.totalorder %s12, 0
    %p53 = por %p51, %p52
    %p54 = scmp.ne.s32.totalorder %s46, %s48
    %p55 = scmp.eq.s32.totalorder %s17, 1
    %p56 = por %p54, %p55
    %p57 = scmp.ne.s32.totalorder %s48, %s49
    %p58 = scmp.eq.s32.totalorder %s17, 0
    %p59 = por %p57, %p58
    %p60 = scmp.ne.s32.totalorder %s48, %s49
    %p61 = scmp.eq.s32.totalorder %s18, 1
    %p62 = por %p60, %p61
    %p64 = scmp.ne.s32.totalorder %s49, %s63
    %p65 = scmp.eq.s32.totalorder %s18, 0
    %p66 = por %p64, %p65
    %s68 = sadd.s32 %s67, 1
    %p71 = scmp.eq.s32.totalorder %s12, 1
    %p72 = scmp.ne.s32.totalorder %s67, %s69
    %p73 = scmp.eq.s32.totalorder %s12, 0
    %p74 = por %p72, %p73
    %p75 = scmp.ne.s32.totalorder %s67, %s69
    %p76 = scmp.eq.s32.totalorder %s17, 1
    %p77 = por %p75, %p76
    %p78 = scmp.ne.s32.totalorder %s69, %s70
    %p79 = scmp.eq.s32.totalorder %s17, 0
    %p80 = por %p78, %p79
    %p81 = scmp.ne.s32.totalorder %s69, %s70
    %p82 = scmp.eq.s32.totalorder %s18, 1
    %p83 = por %p81, %p82
    %p85 = scmp.ne.s32.totalorder %s70, %s84
    %p86 = scmp.eq.s32.totalorder %s18, 0
    %p87 = por %p85, %p86
    %s88 = ssub.s32 %s12, %s19
    %p89 = scmp.eq.s32.totalorder %s88, 0
    %s91 = sadd.s32 %s90, 1
    %s92 = scalar_select %p89, %s90, %s91
    %p95 = pneg %p89
    %p96 = scmp.eq.s32.totalorder %s12, 1
    %p97 = por %p95, %p96
    %p98 = scmp.ne.s32.totalorder %s90, %s93
    %p99 = scmp.eq.s32.totalorder %s12, 0
    %p100 = por %p98, %p99
    %p101 = scmp.ne.s32.totalorder %s90, %s93
    %p102 = scmp.eq.s32.totalorder %s17, 1
    %p103 = por %p101, %p102
    %p104 = scmp.ne.s32.totalorder %s93, %s94
    %p105 = scmp.eq.s32.totalorder %s17, 0
    %p106 = por %p104, %p105
    %p107 = scmp.ne.s32.totalorder %s93, %s94
    %p108 = scmp.eq.s32.totalorder %s18, 1
    %p109 = por %p107, %p108
    %p111 = scmp.ne.s32.totalorder %s94, %s110
    %p112 = scmp.eq.s32.totalorder %s18, 0
    %p113 = por %p111, %p112
    %s114 = ssub.s32 %s12, %s19
    %p115 = scmp.eq.s32.totalorder %s114, 0
    %s117 = sadd.s32 %s116, 1
    %s118 = scalar_select %p115, %s116, %s117
    %p121 = pneg %p115
    %p122 = scmp.eq.s32.totalorder %s12, 1
    %p123 = por %p121, %p122
    %p124 = scmp.ne.s32.totalorder %s116, %s119
    %p125 = scmp.eq.s32.totalorder %s12, 0
    %p126 = por %p124, %p125
    %p127 = scmp.ne.s32.totalorder %s116, %s119
    %p128 = scmp.eq.s32.totalorder %s17, 1
    %p129 = por %p127, %p128
    %p130 = scmp.ne.s32.totalorder %s119, %s120
    %p131 = scmp.eq.s32.totalorder %s17, 0
    %p132 = por %p130, %p131
    %p133 = scmp.ne.s32.totalorder %s119, %s120
    %p134 = scmp.eq.s32.totalorder %s18, 1
    %p135 = por %p133, %p134
    %p137 = scmp.ne.s32.totalorder %s120, %s136
    %p138 = scmp.eq.s32.totalorder %s18, 0
    %p139 = por %p137, %p138
    %s140 = ssub.s32 %s12, %s19
    %p141 = scmp.eq.s32.totalorder %s140, 0
    %s143 = sadd.s32 %s142, 1
    %s144 = scalar_select %p141, %s142, %s143
    %p147 = pneg %p141
    %p148 = scmp.eq.s32.totalorder %s12, 1
    %p149 = por %p147, %p148
    %p150 = scmp.ne.s32.totalorder %s142, %s145
    %p151 = scmp.eq.s32.totalorder %s12, 0
    %p152 = por %p150, %p151
    %p153 = scmp.ne.s32.totalorder %s142, %s145
    %p154 = scmp.eq.s32.totalorder %s17, 1
    %p155 = por %p153, %p154
    %p156 = scmp.ne.s32.totalorder %s145, %s146
    %p157 = scmp.eq.s32.totalorder %s17, 0
    %p158 = por %p156, %p157
    %p159 = scmp.ne.s32.totalorder %s145, %s146
    %p160 = scmp.eq.s32.totalorder %s18, 1
    %p161 = por %p159, %p160
    %p163 = scmp.ne.s32.totalorder %s146, %s162
    %p164 = scmp.eq.s32.totalorder %s18, 0
    %p165 = por %p163, %p164
    %p166 = scmp.le.s32.totalorder 1, %s12
    %p167 = scmp.lt.s32.totalorder %s12, 3
    %p168 = pnand %p166, %p167
    %p169 = pneg %p168
    // Predicated region
    $region9: #{conv_block.2} parent=5 // pred_check
      _
    $region10: #{conv_block.2} parent=5 // pred_check_branch
      %171 = sbr.rel (%p168) target = $region12
    $region11: #{conv_block.2} parent=5 // pred_region
      %s172 = ssub.s32 %s12, 1
      // Predicated region
      $region13: #{conv_block.2} parent=11 // pred_check
        %p173 = pneg %p59
      $region14: #{conv_block.2} parent=11 // pred_check_branch
        %175 = sbr.rel (%p173) target = $region16
      $region15: #{conv_block.2} parent=11 // pred_region
        _
      $region16: #{conv_block.2} parent=11 // pred_fallthru
        _
      // Predicated region
      $region17: #{conv_block.2} parent=11 // pred_check
        %p176 = pneg %p80
      $region18: #{conv_block.2} parent=11 // pred_check_branch
        %178 = sbr.rel (%p176) target = $region20
      $region19: #{conv_block.2} parent=11 // pred_region
        _
      $region20: #{conv_block.2} parent=11 // pred_fallthru
        _
    $region12: #{conv_block.2} parent=5 // pred_fallthru
      _
    %p179 = scmp.lt.s32.totalorder %s12, 2
    // Predicated region
    $region21: #{conv_block.2} parent=5 // pred_check
      %p180 = pneg %p179
    $region22: #{conv_block.2} parent=5 // pred_check_branch
      %182 = sbr.rel (%p180) target = $region24
    $region23: #{conv_block.2} parent=5 // pred_region
      // Predicated region
      $region25: #{conv_block.2} parent=23 // pred_check
        %p183 = pneg %p32
      $region26: #{conv_block.2} parent=23 // pred_check_branch
        %185 = sbr.rel (%p183) target = $region28
      $region27: #{conv_block.2} parent=23 // pred_region
        %s186 = smul.u32 32, %s12
        %p187 = scmp.lt.s32.totalorder %s186, 63
        %s188 = scalar_select %p187, %s186, 63
        %s189 = smul.addr %s188, 8
        %s190 = scalar_lea.vmem %s0, %s189
        %s191 = smul.u32 32, %s12
      $region28: #{conv_block.2} parent=23 // pred_fallthru
        _
    $region24: #{conv_block.2} parent=5 // pred_fallthru
      _
    %p192 = scmp.le.s32.totalorder 1, %s12
    %p193 = scmp.lt.s32.totalorder %s12, 3
    %p194 = pnand %p192, %p193
    %p195 = pneg %p194
    // Predicated region
    $region29: #{conv_block.2} parent=5 // pred_check
      _
    $region30: #{conv_block.2} parent=5 // pred_check_branch
      %197 = sbr.rel (%p194) target = $region32
    $region31: #{conv_block.2} parent=5 // pred_region
      %s198 = ssub.s32 %s12, 1
      %s199 = smul.u32 32, %s17
      %p200 = scmp.lt.s32.totalorder %s199, 63
      %s201 = scalar_select %p200, %s199, 63
      %s202 = smul.addr %s201, 8
      %s203 = scalar_lea.vmem %s0, %s202
      %p204 = pneg %p38
      %p205 = pneg %p35
      %p206 = pneg %p59
      %p207 = pneg %p56
      %p208 = pneg %p80
      %p209 = pneg %p77
      %p210 = pneg %p106
      %p211 = pneg %p103
      %s212 = smul.u32 32, %s17
      %p213 = scmp.lt.s32.totalorder %s212, 63
      %s214 = scalar_select %p213, %s212, 63
      %s215 = smul.addr %s214, 8
      %s216 = scalar_lea.vmem %s3, %s215
      %p217 = pneg %p132
      %p218 = pneg %p129
      %p219 = scmp.lt.s32.totalorder %s17, 1
      %s220 = scalar_select %p219, %s17, 1
      %s221 = scalar_lea.vmem %s4, %s220
      %p222 = pneg %p158
      %p223 = pneg %p155
      %p224 = scmp.lt.s32.totalorder %s17, 1
      %s225 = scalar_select %p224, %s17, 1
      %s226 = scalar_lea.vmem %s5, %s225
      %s227 = smul.u32 32, %s17
      %p228 = scmp.lt.s32.totalorder %s227, 63
      %s229 = scalar_select %p228, %s227, 63
      %s230 = smul.addr %s229, 8
      %s231 = scalar_lea.vmem %s0, %s230
      %s232 = smul.u32 32, %s17
      %s233 = smul.u32 32, %s17
      %p234 = scmp.lt.s32.totalorder %s233, 63
      %s235 = scalar_select %p234, %s233, 63
      %s236 = smul.addr %s235, 8
      %s237 = scalar_lea.vmem %s3, %s236
      %s238 = smul.u32 32, %s17
      %p239 = scmp.lt.s32.totalorder %s17, 1
      %s240 = scalar_select %p239, %s17, 1
      %s241 = scalar_lea.vmem %s4, %s240
      %p242 = scmp.lt.s32.totalorder %s17, 1
      %s243 = scalar_select %p242, %s17, 1
      %s244 = scalar_lea.vmem %s5, %s243
      %v245 = vld [vmem:[%s231] sm:$0xff]
      %v246 = vld [vmem:[%s231 + $0x8] sm:$0xff]
      %v247 = vld [vmem:[%s231 + $0x10] sm:$0xff]
      %v248 = vld [vmem:[%s231 + $0x18] sm:$0xff]
      %v249 = vld [vmem:[%s231 + $0x20] sm:$0xff]
      %v250 = vld [vmem:[%s231 + $0x28] sm:$0xff]
      %v251 = vld [vmem:[%s231 + $0x30] sm:$0xff]
      %v252 = vld [vmem:[%s231 + $0x38] sm:$0xff]
      %v253 = vld [vmem:[%s231 + $0x40] sm:$0xff]
      %v254 = vld [vmem:[%s231 + $0x48] sm:$0xff]
      %v255 = vld [vmem:[%s231 + $0x50] sm:$0xff]
      %v256 = vld [vmem:[%s231 + $0x58] sm:$0xff]
      %v257 = vld [vmem:[%s231 + $0x60] sm:$0xff]
      %v258 = vld [vmem:[%s231 + $0x68] sm:$0xff]
      %v259 = vld [vmem:[%s231 + $0x70] sm:$0xff]
      %v260 = vld [vmem:[%s231 + $0x78] sm:$0xff]
      %v261 = vld [vmem:[%s231 + $0x80] sm:$0xff]
      %v262 = vld [vmem:[%s231 + $0x88] sm:$0xff]
      %v263 = vld [vmem:[%s231 + $0x90] sm:$0xff]
      %v264 = vld [vmem:[%s231 + $0x98] sm:$0xff]
      %v265 = vld [vmem:[%s231 + $0xa0] sm:$0xff]
      %v266 = vld [vmem:[%s231 + $0xa8] sm:$0xff]
      %v267 = vld [vmem:[%s231 + $0xb0] sm:$0xff]
      %v268 = vld [vmem:[%s231 + $0xb8] sm:$0xff]
      %v269 = vld [vmem:[%s231 + $0xc0] sm:$0xff]
      %v270 = vld [vmem:[%s231 + $0xc8] sm:$0xff]
      %v271 = vld [vmem:[%s231 + $0xd0] sm:$0xff]
      %v272 = vld [vmem:[%s231 + $0xd8] sm:$0xff]
      %v273 = vld [vmem:[%s231 + $0xe0] sm:$0xff]
      %v274 = vld [vmem:[%s231 + $0xe8] sm:$0xff]
      %v275 = vld [vmem:[%s231 + $0xf0] sm:$0xff]
      %v276 = vld [vmem:[%s231 + $0xf8] sm:$0xff]
      %v277 = vld [vmem:[%s1] sm:$0xff]
      %v278 = vld [vmem:[%s1 + $0x8] sm:$0xff]
      %v279 = vld [vmem:[%s1 + $0x10] sm:$0xff]
      %v280 = vld [vmem:[%s1 + $0x18] sm:$0xff]
      %v281 = vld [vmem:[%s1 + $0x20] sm:$0xf]
      %v282 = vld [vmem:[%s2] sm:$0x1]
      %v284 = vperm.slane %v282, 0
      %vm286 = vcmask 293888
      %v288 = vsel %vm286, %v245, 0
      %v291 = vsel %vm286, %v246, 0
      %v294 = vsel %vm286, %v247, 0
      %v297 = vsel %vm286, %v248, 0
      %v300 = vsel %vm286, %v249, 0
      %v303 = vsel %vm286, %v250, 0
      %v306 = vsel %vm286, %v251, 0
      %v309 = vsel %vm286, %v252, 0
      %v312 = vsel %vm286, %v253, 0
      %v315 = vsel %vm286, %v254, 0
      %v318 = vsel %vm286, %v255, 0
      %v321 = vsel %vm286, %v256, 0
      %v324 = vsel %vm286, %v257, 0
      %v327 = vsel %vm286, %v258, 0
      %v330 = vsel %vm286, %v259, 0
      %v333 = vsel %vm286, %v260, 0
      %v336 = vsel %vm286, %v261, 0
      %v339 = vsel %vm286, %v262, 0
      %v342 = vsel %vm286, %v263, 0
      %v345 = vsel %vm286, %v264, 0
      %v348 = vsel %vm286, %v265, 0
      %v351 = vsel %vm286, %v266, 0
      %v354 = vsel %vm286, %v267, 0
      %v357 = vsel %vm286, %v268, 0
      %v360 = vsel %vm286, %v269, 0
      %v363 = vsel %vm286, %v270, 0
      %v366 = vsel %vm286, %v271, 0
      %v369 = vsel %vm286, %v272, 0
      %v372 = vsel %vm286, %v273, 0
      %v375 = vsel %vm286, %v274, 0
      %v378 = vsel %vm286, %v275, 0
      %v381 = vsel %vm286, %v276, 0
      %vm383 = vcmask 1043456
      %v385 = vsel %vm383, %v281, 0
      %387 = vmatpush.msra.mxu0 0.0
      %388 = vmatpush.msra.mxu0 0.0
      %389 = vmatpush.msra.mxu0 0.0
      %390 = vmatpush.msra.mxu0 0.0
      %391 = vmatpush.msra.mxu0 0.0
      %392 = vmatpush.msra.mxu0 0.0
      %393 = vmatpush.msra.mxu0 0.0
      %394 = vmatpush.msra.mxu0 0.0
      %395 = vmatpush.msra.mxu0 0.0
      %396 = vmatpush.msra.mxu0 0.0
      %397 = vmatpush.msra.mxu0 0.0
      %398 = vmatpush.msra.mxu0 %v385
      %399 = vmatpush.msra.mxu0 %v280
      %400 = vmatpush.msra.mxu0 %v279
      %401 = vmatpush.msra.mxu0 %v278
      %402 = vmatpush.msra.mxu0 %v277
      %403 = vmatmul.f32.gmra.mxu0 %v288
      %v404 = vpop.f32.mrf.mxu0
      %v405 = vadd.f32 %v284, %v404
      %406 = vmatmul.f32.gmra.mxu0 %v291
      %v407 = vpop.f32.mrf.mxu0
      %v408 = vadd.f32 %v284, %v407
      %409 = vmatmul.f32.gmra.mxu0 %v294
      %v410 = vpop.f32.mrf.mxu0
      %v411 = vadd.f32 %v284, %v410
      %412 = vmatmul.f32.gmra.mxu0 %v297
      %v413 = vpop.f32.mrf.mxu0
      %v414 = vadd.f32 %v284, %v413
      %415 = vmatmul.f32.gmra.mxu0 %v300
      %v416 = vpop.f32.mrf.mxu0
      %v417 = vadd.f32 %v284, %v416
      %418 = vmatmul.f32.gmra.mxu0 %v303
      %v419 = vpop.f32.mrf.mxu0
      %v420 = vadd.f32 %v284, %v419
      %421 = vmatmul.f32.gmra.mxu0 %v306
      %v422 = vpop.f32.mrf.mxu0
      %v423 = vadd.f32 %v284, %v422
      %424 = vmatmul.f32.gmra.mxu0 %v309
      %v425 = vpop.f32.mrf.mxu0
      %v426 = vadd.f32 %v284, %v425
      %427 = vmatmul.f32.gmra.mxu0 %v312
      %v428 = vpop.f32.mrf.mxu0
      %v429 = vadd.f32 %v284, %v428
      %430 = vmatmul.f32.gmra.mxu0 %v315
      %v431 = vpop.f32.mrf.mxu0
      %v432 = vadd.f32 %v284, %v431
      %433 = vmatmul.f32.gmra.mxu0 %v318
      %v434 = vpop.f32.mrf.mxu0
      %v435 = vadd.f32 %v284, %v434
      %436 = vmatmul.f32.gmra.mxu0 %v321
      %v437 = vpop.f32.mrf.mxu0
      %v438 = vadd.f32 %v284, %v437
      %439 = vmatmul.f32.gmra.mxu0 %v324
      %v440 = vpop.f32.mrf.mxu0
      %v441 = vadd.f32 %v284, %v440
      %442 = vmatmul.f32.gmra.mxu0 %v327
      %v443 = vpop.f32.mrf.mxu0
      %v444 = vadd.f32 %v284, %v443
      %445 = vmatmul.f32.gmra.mxu0 %v330
      %v446 = vpop.f32.mrf.mxu0
      %v447 = vadd.f32 %v284, %v446
      %448 = vmatmul.f32.gmra.mxu0 %v333
      %v449 = vpop.f32.mrf.mxu0
      %v450 = vadd.f32 %v284, %v449
      %451 = vmatmul.f32.gmra.mxu0 %v336
      %v452 = vpop.f32.mrf.mxu0
      %v453 = vadd.f32 %v284, %v452
      %454 = vmatmul.f32.gmra.mxu0 %v339
      %v455 = vpop.f32.mrf.mxu0
      %v456 = vadd.f32 %v284, %v455
      %457 = vmatmul.f32.gmra.mxu0 %v342
      %v458 = vpop.f32.mrf.mxu0
      %v459 = vadd.f32 %v284, %v458
      %460 = vmatmul.f32.gmra.mxu0 %v345
      %v461 = vpop.f32.mrf.mxu0
      %v462 = vadd.f32 %v284, %v461
      %463 = vmatmul.f32.gmra.mxu0 %v348
      %v464 = vpop.f32.mrf.mxu0
      %v465 = vadd.f32 %v284, %v464
      %466 = vmatmul.f32.gmra.mxu0 %v351
      %v467 = vpop.f32.mrf.mxu0
      %v468 = vadd.f32 %v284, %v467
      %469 = vmatmul.f32.gmra.mxu0 %v354
      %v470 = vpop.f32.mrf.mxu0
      %v471 = vadd.f32 %v284, %v470
      %472 = vmatmul.f32.gmra.mxu0 %v357
      %v473 = vpop.f32.mrf.mxu0
      %v474 = vadd.f32 %v284, %v473
      %475 = vmatmul.f32.gmra.mxu0 %v360
      %v476 = vpop.f32.mrf.mxu0
      %v477 = vadd.f32 %v284, %v476
      %478 = vmatmul.f32.gmra.mxu0 %v363
      %v479 = vpop.f32.mrf.mxu0
      %v480 = vadd.f32 %v284, %v479
      %481 = vmatmul.f32.gmra.mxu0 %v366
      %v482 = vpop.f32.mrf.mxu0
      %v483 = vadd.f32 %v284, %v482
      %484 = vmatmul.f32.gmra.mxu0 %v369
      %v485 = vpop.f32.mrf.mxu0
      %v486 = vadd.f32 %v284, %v485
      %487 = vmatmul.f32.gmra.mxu0 %v372
      %v488 = vpop.f32.mrf.mxu0
      %v489 = vadd.f32 %v284, %v488
      %490 = vmatmul.f32.gmra.mxu0 %v375
      %v491 = vpop.f32.mrf.mxu0
      %v492 = vadd.f32 %v284, %v491
      %493 = vmatmul.f32.gmra.mxu0 %v378
      %v494 = vpop.f32.mrf.mxu0
      %v495 = vadd.f32 %v284, %v494
      %496 = vmatmul.f32.gmra.mxu0 %v381
      %v497 = vpop.f32.mrf.mxu0
      %v498 = vadd.f32 %v284, %v497
      %499 = vdwg.mxu0
      %v500 = vmax.f32 %v405, 0.0
      %v501 = vmax.f32 %v408, 0.0
      %v502 = vmax.f32 %v411, 0.0
      %v503 = vmax.f32 %v414, 0.0
      %v504 = vmax.f32 %v417, 0.0
      %v505 = vmax.f32 %v420, 0.0
      %v506 = vmax.f32 %v423, 0.0
      %v507 = vmax.f32 %v426, 0.0
      %v508 = vmax.f32 %v429, 0.0
      %v509 = vmax.f32 %v432, 0.0
      %v510 = vmax.f32 %v435, 0.0
      %v511 = vmax.f32 %v438, 0.0
      %v512 = vmax.f32 %v441, 0.0
      %v513 = vmax.f32 %v444, 0.0
      %v514 = vmax.f32 %v447, 0.0
      %v515 = vmax.f32 %v450, 0.0
      %v516 = vmax.f32 %v453, 0.0
      %v517 = vmax.f32 %v456, 0.0
      %v518 = vmax.f32 %v459, 0.0
      %v519 = vmax.f32 %v462, 0.0
      %v520 = vmax.f32 %v465, 0.0
      %v521 = vmax.f32 %v468, 0.0
      %v522 = vmax.f32 %v471, 0.0
      %v523 = vmax.f32 %v474, 0.0
      %v524 = vmax.f32 %v477, 0.0
      %v525 = vmax.f32 %v480, 0.0
      %v526 = vmax.f32 %v483, 0.0
      %v527 = vmax.f32 %v486, 0.0
      %v528 = vmax.f32 %v489, 0.0
      %v529 = vmax.f32 %v492, 0.0
      %v530 = vmax.f32 %v495, 0.0
      %v531 = vmax.f32 %v498, 0.0
      %vm532 = vcmask 64512
      %533 = vst.msk [vmem:[%s237] sm:$0xff] %vm532, %v500
      %534 = vst.msk [vmem:[%s237 + $0x8] sm:$0xff] %vm532, %v501
      %535 = vst.msk [vmem:[%s237 + $0x10] sm:$0xff] %vm532, %v502
      %536 = vst.msk [vmem:[%s237 + $0x18] sm:$0xff] %vm532, %v503
      %537 = vst.msk [vmem:[%s237 + $0x20] sm:$0xff] %vm532, %v504
      %538 = vst.msk [vmem:[%s237 + $0x28] sm:$0xff] %vm532, %v505
      %539 = vst.msk [vmem:[%s237 + $0x30] sm:$0xff] %vm532, %v506
      %540 = vst.msk [vmem:[%s237 + $0x38] sm:$0xff] %vm532, %v507
      %541 = vst.msk [vmem:[%s237 + $0x40] sm:$0xff] %vm532, %v508
      %542 = vst.msk [vmem:[%s237 + $0x48] sm:$0xff] %vm532, %v509
      %543 = vst.msk [vmem:[%s237 + $0x50] sm:$0xff] %vm532, %v510
      %544 = vst.msk [vmem:[%s237 + $0x58] sm:$0xff] %vm532, %v511
      %545 = vst.msk [vmem:[%s237 + $0x60] sm:$0xff] %vm532, %v512
      %546 = vst.msk [vmem:[%s237 + $0x68] sm:$0xff] %vm532, %v513
      %547 = vst.msk [vmem:[%s237 + $0x70] sm:$0xff] %vm532, %v514
      %548 = vst.msk [vmem:[%s237 + $0x78] sm:$0xff] %vm532, %v515
      %549 = vst.msk [vmem:[%s237 + $0x80] sm:$0xff] %vm532, %v516
      %550 = vst.msk [vmem:[%s237 + $0x88] sm:$0xff] %vm532, %v517
      %551 = vst.msk [vmem:[%s237 + $0x90] sm:$0xff] %vm532, %v518
      %552 = vst.msk [vmem:[%s237 + $0x98] sm:$0xff] %vm532, %v519
      %553 = vst.msk [vmem:[%s237 + $0xa0] sm:$0xff] %vm532, %v520
      %554 = vst.msk [vmem:[%s237 + $0xa8] sm:$0xff] %vm532, %v521
      %555 = vst.msk [vmem:[%s237 + $0xb0] sm:$0xff] %vm532, %v522
      %556 = vst.msk [vmem:[%s237 + $0xb8] sm:$0xff] %vm532, %v523
      %557 = vst.msk [vmem:[%s237 + $0xc0] sm:$0xff] %vm532, %v524
      %558 = vst.msk [vmem:[%s237 + $0xc8] sm:$0xff] %vm532, %v525
      %559 = vst.msk [vmem:[%s237 + $0xd0] sm:$0xff] %vm532, %v526
      %560 = vst.msk [vmem:[%s237 + $0xd8] sm:$0xff] %vm532, %v527
      %561 = vst.msk [vmem:[%s237 + $0xe0] sm:$0xff] %vm532, %v528
      %562 = vst.msk [vmem:[%s237 + $0xe8] sm:$0xff] %vm532, %v529
      %563 = vst.msk [vmem:[%s237 + $0xf0] sm:$0xff] %vm532, %v530
      %564 = vst.msk [vmem:[%s237 + $0xf8] sm:$0xff] %vm532, %v531
      %v565 = vsel %vm532, %v500, 0.0
      %v566 = vsel %vm532, %v501, 0.0
      %v567 = vadd.f32 %v565, %v566
      %v568 = vsel %vm532, %v502, 0.0
      %v569 = vadd.f32 %v567, %v568
      %v570 = vsel %vm532, %v503, 0.0
      %v571 = vadd.f32 %v569, %v570
      %v572 = vsel %vm532, %v504, 0.0
      %v573 = vadd.f32 %v571, %v572
      %v574 = vsel %vm532, %v505, 0.0
      %v575 = vadd.f32 %v573, %v574
      %v576 = vsel %vm532, %v506, 0.0
      %v577 = vadd.f32 %v575, %v576
      %v578 = vsel %vm532, %v507, 0.0
      %v579 = vadd.f32 %v577, %v578
      %v580 = vsel %vm532, %v508, 0.0
      %v581 = vadd.f32 %v579, %v580
      %v582 = vsel %vm532, %v509, 0.0
      %v583 = vadd.f32 %v581, %v582
      %v584 = vsel %vm532, %v510, 0.0
      %v585 = vadd.f32 %v583, %v584
      %v586 = vsel %vm532, %v511, 0.0
      %v587 = vadd.f32 %v585, %v586
      %v588 = vsel %vm532, %v512, 0.0
      %v589 = vadd.f32 %v587, %v588
      %v590 = vsel %vm532, %v513, 0.0
      %v591 = vadd.f32 %v589, %v590
      %v592 = vsel %vm532, %v514, 0.0
      %v593 = vadd.f32 %v591, %v592
      %v594 = vsel %vm532, %v515, 0.0
      %v595 = vadd.f32 %v593, %v594
      %v596 = vsel %vm532, %v516, 0.0
      %v597 = vadd.f32 %v595, %v596
      %v598 = vsel %vm532, %v517, 0.0
      %v599 = vadd.f32 %v597, %v598
      %v600 = vsel %vm532, %v518, 0.0
      %v601 = vadd.f32 %v599, %v600
      %v602 = vsel %vm532, %v519, 0.0
      %v603 = vadd.f32 %v601, %v602
      %v604 = vsel %vm532, %v520, 0.0
      %v605 = vadd.f32 %v603, %v604
      %v606 = vsel %vm532, %v521, 0.0
      %v607 = vadd.f32 %v605, %v606
      %v608 = vsel %vm532, %v522, 0.0
      %v609 = vadd.f32 %v607, %v608
      %v610 = vsel %vm532, %v523, 0.0
      %v611 = vadd.f32 %v609, %v610
      %v612 = vsel %vm532, %v524, 0.0
      %v613 = vadd.f32 %v611, %v612
      %v614 = vsel %vm532, %v525, 0.0
      %v615 = vadd.f32 %v613, %v614
      %v616 = vsel %vm532, %v526, 0.0
      %v617 = vadd.f32 %v615, %v616
      %v618 = vsel %vm532, %v527, 0.0
      %v619 = vadd.f32 %v617, %v618
      %v620 = vsel %vm532, %v528, 0.0
      %v621 = vadd.f32 %v619, %v620
      %v622 = vsel %vm532, %v529, 0.0
      %v623 = vadd.f32 %v621, %v622
      %v624 = vsel %vm532, %v530, 0.0
      %v625 = vadd.f32 %v623, %v624
      %v626 = vsel %vm532, %v531, 0.0
      %v627 = vadd.f32 %v625, %v626
      %v628 = vrot.slane %v627, 4
      %v629 = vadd.f32 %v627, %v628
      %v630 = vrot.slane %v629, 2
      %v631 = vadd.f32 %v629, %v630
      %v632 = vrot.slane %v631, 1
      %v633 = vadd.f32 %v631, %v632
      %vm634 = vcmask 57344
      %635 = vst.msk [vmem:[%s241] sm:$0x1] %vm634, %v633
      %v636 = vmul.f32 %v500, %v500
      %v637 = vmul.f32 %v501, %v501
      %v638 = vmul.f32 %v502, %v502
      %v639 = vmul.f32 %v503, %v503
      %v640 = vmul.f32 %v504, %v504
      %v641 = vmul.f32 %v505, %v505
      %v642 = vmul.f32 %v506, %v506
      %v643 = vmul.f32 %v507, %v507
      %v644 = vmul.f32 %v508, %v508
      %v645 = vmul.f32 %v509, %v509
      %v646 = vmul.f32 %v510, %v510
      %v647 = vmul.f32 %v511, %v511
      %v648 = vmul.f32 %v512, %v512
      %v649 = vmul.f32 %v513, %v513
      %v650 = vmul.f32 %v514, %v514
      %v651 = vmul.f32 %v515, %v515
      %v652 = vmul.f32 %v516, %v516
      %v653 = vmul.f32 %v517, %v517
      %v654 = vmul.f32 %v518, %v518
      %v655 = vmul.f32 %v519, %v519
      %v656 = vmul.f32 %v520, %v520
      %v657 = vmul.f32 %v521, %v521
      %v658 = vmul.f32 %v522, %v522
      %v659 = vmul.f32 %v523, %v523
      %v660 = vmul.f32 %v524, %v524
      %v661 = vmul.f32 %v525, %v525
      %v662 = vmul.f32 %v526, %v526
      %v663 = vmul.f32 %v527, %v527
      %v664 = vmul.f32 %v528, %v528
      %v665 = vmul.f32 %v529, %v529
      %v666 = vmul.f32 %v530, %v530
      %v667 = vmul.f32 %v531, %v531
      %v668 = vsel %vm532, %v636, 0.0
      %v669 = vsel %vm532, %v637, 0.0
      %v670 = vadd.f32 %v668, %v669
      %v671 = vsel %vm532, %v638, 0.0
      %v672 = vadd.f32 %v670, %v671
      %v673 = vsel %vm532, %v639, 0.0
      %v674 = vadd.f32 %v672, %v673
      %v675 = vsel %vm532, %v640, 0.0
      %v676 = vadd.f32 %v674, %v675
      %v677 = vsel %vm532, %v641, 0.0
      %v678 = vadd.f32 %v676, %v677
      %v679 = vsel %vm532, %v642, 0.0
      %v680 = vadd.f32 %v678, %v679
      %v681 = vsel %vm532, %v643, 0.0
      %v682 = vadd.f32 %v680, %v681
      %v683 = vsel %vm532, %v644, 0.0
      %v684 = vadd.f32 %v682, %v683
      %v685 = vsel %vm532, %v645, 0.0
      %v686 = vadd.f32 %v684, %v685
      %v687 = vsel %vm532, %v646, 0.0
      %v688 = vadd.f32 %v686, %v687
      %v689 = vsel %vm532, %v647, 0.0
      %v690 = vadd.f32 %v688, %v689
      %v691 = vsel %vm532, %v648, 0.0
      %v692 = vadd.f32 %v690, %v691
      %v693 = vsel %vm532, %v649, 0.0
      %v694 = vadd.f32 %v692, %v693
      %v695 = vsel %vm532, %v650, 0.0
      %v696 = vadd.f32 %v694, %v695
      %v697 = vsel %vm532, %v651, 0.0
      %v698 = vadd.f32 %v696, %v697
      %v699 = vsel %vm532, %v652, 0.0
      %v700 = vadd.f32 %v698, %v699
      %v701 = vsel %vm532, %v653, 0.0
      %v702 = vadd.f32 %v700, %v701
      %v703 = vsel %vm532, %v654, 0.0
      %v704 = vadd.f32 %v702, %v703
      %v705 = vsel %vm532, %v655, 0.0
      %v706 = vadd.f32 %v704, %v705
      %v707 = vsel %vm532, %v656, 0.0
      %v708 = vadd.f32 %v706, %v707
      %v709 = vsel %vm532, %v657, 0.0
      %v710 = vadd.f32 %v708, %v709
      %v711 = vsel %vm532, %v658, 0.0
      %v712 = vadd.f32 %v710, %v711
      %v713 = vsel %vm532, %v659, 0.0
      %v714 = vadd.f32 %v712, %v713
      %v715 = vsel %vm532, %v660, 0.0
      %v716 = vadd.f32 %v714, %v715
      %v717 = vsel %vm532, %v661, 0.0
      %v718 = vadd.f32 %v716, %v717
      %v719 = vsel %vm532, %v662, 0.0
      %v720 = vadd.f32 %v718, %v719
      %v721 = vsel %vm532, %v663, 0.0
      %v722 = vadd.f32 %v720, %v721
      %v723 = vsel %vm532, %v664, 0.0
      %v724 = vadd.f32 %v722, %v723
      %v725 = vsel %vm532, %v665, 0.0
      %v726 = vadd.f32 %v724, %v725
      %v727 = vsel %vm532, %v666, 0.0
      %v728 = vadd.f32 %v726, %v727
      %v729 = vsel %vm532, %v667, 0.0
      %v730 = vadd.f32 %v728, %v729
      %v731 = vrot.slane %v730, 4
      %v732 = vadd.f32 %v730, %v731
      %v733 = vrot.slane %v732, 2
      %v734 = vadd.f32 %v732, %v733
      %v735 = vrot.slane %v734, 1
      %v736 = vadd.f32 %v734, %v735
      %737 = vst.msk [vmem:[%s244] sm:$0x1] %vm634, %v736
      %s738 = smul.u32 32, %s17
      %p739 = scmp.lt.s32.totalorder %s738, 63
      %s740 = scalar_select %p739, %s738, 63
      %s741 = smul.addr %s740, 8
      %s742 = scalar_lea.vmem %s3, %s741
      %p743 = scmp.lt.s32.totalorder %s17, 1
      %s744 = scalar_select %p743, %s17, 1
      %s745 = scalar_lea.vmem %s4, %s744
      %p746 = scmp.lt.s32.totalorder %s17, 1
      %s747 = scalar_select %p746, %s17, 1
      %s748 = scalar_lea.vmem %s5, %s747
      // Predicated region
      $region33: #{conv_block.2} parent=31 // pred_check
        %p749 = pneg %p103
      $region34: #{conv_block.2} parent=31 // pred_check_branch
        %751 = sbr.rel (%p749) target = $region36
      $region35: #{conv_block.2} parent=31 // pred_region
        %s752 = smul.u32 32, %s17
      $region36: #{conv_block.2} parent=31 // pred_fallthru
        _
      // Predicated region
      $region37: #{conv_block.2} parent=31 // pred_check
        %p753 = pneg %p129
      $region38: #{conv_block.2} parent=31 // pred_check_branch
        %755 = sbr.rel (%p753) target = $region40
      $region39: #{conv_block.2} parent=31 // pred_region
        _
      $region40: #{conv_block.2} parent=31 // pred_fallthru
        _
      // Predicated region
      $region41: #{conv_block.2} parent=31 // pred_check
        %p756 = pneg %p155
      $region42: #{conv_block.2} parent=31 // pred_check_branch
        %758 = sbr.rel (%p756) target = $region44
      $region43: #{conv_block.2} parent=31 // pred_region
        _
      $region44: #{conv_block.2} parent=31 // pred_fallthru
        _
    $region32: #{conv_block.2} parent=5 // pred_fallthru
      _
    %p759 = scmp.le.s32.totalorder 2, %s12
    // Predicated region
    $region45: #{conv_block.2} parent=5 // pred_check
      %p760 = pneg %p759
    $region46: #{conv_block.2} parent=5 // pred_check_branch
      %762 = sbr.rel (%p760) target = $region48
    $region47: #{conv_block.2} parent=5 // pred_region
      %s763 = ssub.s32 %s12, 2
      // Predicated region
      $region49: #{conv_block.2} parent=47 // pred_check
        %p764 = pneg %p109
      $region50: #{conv_block.2} parent=47 // pred_check_branch
        %766 = sbr.rel (%p764) target = $region52
      $region51: #{conv_block.2} parent=47 // pred_region
        %s767 = smul.u32 32, %s18
        %p768 = scmp.lt.s32.totalorder %s767, 63
        %s769 = scalar_select %p768, %s767, 63
        %s770 = smul.addr %s769, 8
        %s771 = scalar_lea.vmem %s3, %s770
      $region52: #{conv_block.2} parent=47 // pred_fallthru
        _
      // Predicated region
      $region53: #{conv_block.2} parent=47 // pred_check
        %p772 = pneg %p135
      $region54: #{conv_block.2} parent=47 // pred_check_branch
        %774 = sbr.rel (%p772) target = $region56
      $region55: #{conv_block.2} parent=47 // pred_region
        %p775 = scmp.lt.s32.totalorder %s18, 1
        %s776 = scalar_select %p775, %s18, 1
        %s777 = scalar_lea.vmem %s4, %s776
      $region56: #{conv_block.2} parent=47 // pred_fallthru
        _
      // Predicated region
      $region57: #{conv_block.2} parent=47 // pred_check
        %p778 = pneg %p161
      $region58: #{conv_block.2} parent=47 // pred_check_branch
        %780 = sbr.rel (%p778) target = $region60
      $region59: #{conv_block.2} parent=47 // pred_region
        %p781 = scmp.lt.s32.totalorder %s18, 1
        %s782 = scalar_select %p781, %s18, 1
        %s783 = scalar_lea.vmem %s5, %s782
      $region60: #{conv_block.2} parent=47 // pred_fallthru
        _
    $region48: #{conv_block.2} parent=5 // pred_fallthru
      _
  $region6: #{conv_block.2} parent=0 // loop_footer
    %s16 = sadd.s32 1, %s12
  $region7: #{conv_block.2} parent=0 // loop_footer_branch
    %11 = sbr.rel target = $region3
  $region8: #{conv_block.2} parent=0 // loop_exit
    _

</llo_original>
